<compile_context>
chip_gen: v5e
topology: v5e:2x2
jax: 0.10.0
libtpu: 0.0.40
codegen_flags: <defaults>
</compile_context>

<pallas_src>
import numpy as np
import jax
import jax.numpy as jnp
from jax.experimental import pallas as pl
from jax.experimental.pallas import tpu as pltpu


TILE_B = 1024  # batch columns per grid step (multiple of 1024 keeps (8,128) tiling exact)


def _puzzle_loss_kernel(x_ref, t_ref, out_ref):
    x = x_ref[...]            # (25, S, 128) f32 ; [p, :, :] = cell p of S*128 puzzles
    t = t_ref[...]            # (25, S, 128) f32
    sub = x.shape[1]

    # ---- loss1 partial: sum |x - t| over the whole tile ----
    abs_sum = jnp.sum(jnp.abs(x - t))

    # ---- duplicate counting: static unroll over predecessor pairs ----
    # cell (i, j) counts as a row-duplicate if it equals ANY earlier cell in row i,
    # and (independently) as a column-duplicate if it equals ANY earlier cell in
    # column j — exactly the PyTorch set-membership semantics (exact fp equality).
    cells = [x[p] for p in range(25)]                    # each (S, 128), free slices
    dup = jnp.zeros((sub, 128), jnp.float32)             # per-lane duplicate count

    # row duplicates
    for i in range(5):
        for j in range(1, 5):
            p = 5 * i + j
            flag = cells[p] == cells[5 * i + 0]
            for jj in range(1, j):
                flag = flag | (cells[p] == cells[5 * i + jj])
            dup += flag.astype(jnp.float32)

    # column duplicates
    for j in range(5):
        for i in range(1, 5):
            p = 5 * i + j
            flag = cells[p] == cells[j]
            for ii in range(1, i):
                flag = flag | (cells[p] == cells[5 * ii + j])
            dup += flag.astype(jnp.float32)

    dup_sum = jnp.sum(dup)

    # ---- out-of-bounds flag for this tile (1.0 iff any element outside [0.5, 5.5]) ----
    oob = jnp.max(((x < 0.5) | (x > 5.5)).astype(jnp.float32))

    # ---- write per-tile partials into lanes 0/1/2 of this tile's output block ----
    lane = jax.lax.broadcasted_iota(jnp.int32, out_ref.shape, 2)
    out_ref[...] = jnp.where(lane == 0, abs_sum,
                   jnp.where(lane == 1, dup_sum,
                   jnp.where(lane == 2, oob, jnp.float32(0.0))))


def custom_puzzle_loss(preds, targets, *, tile_b=TILE_B):
    """Pallas equivalent of CustomPuzzleLoss.forward(preds, targets) -> scalar f32."""
    assert tile_b % 1024 == 0
    preds_flat = jnp.reshape(preds, (-1,)).astype(jnp.float32)
    targets_flat = jnp.reshape(targets, (-1,)).astype(jnp.float32)   # targets.float()
    n = targets_flat.shape[0]
    B = n // 25

    # lane-dense layout: cells on the leading axis, batch on (sublane, lane)
    x = preds_flat.reshape(B, 25).T          # (25, B)
    t = targets_flat.reshape(B, 25).T        # (25, B)

    num_tiles = pl.cdiv(B, tile_b)
    Bp = num_tiles * tile_b
    pad = Bp - B
    if pad:
        # Latin-square padding: each padded "puzzle" has distinct values 1..5 in
        # every row and column, all inside [0.5, 5.5], and targets == preds there,
        # so padded columns contribute nothing to any of the three loss terms.
        c = jnp.arange(25)
        latin = ((c // 5 + c % 5) % 5 + 1).astype(jnp.float32)[:, None]   # (25, 1)
        pad_cols = jnp.broadcast_to(latin, (25, pad))
        x = jnp.concatenate([x, pad_cols], axis=1)
        t = jnp.concatenate([t, pad_cols], axis=1)

    x = x.reshape(25, Bp // 128, 128)
    t = t.reshape(25, Bp // 128, 128)
    tile_sub = tile_b // 128

    flops = 14 * 25 * Bp                      # ~abs + 100 compares/ORs per grid
    bytes_accessed = 2 * 25 * Bp * 4 + num_tiles * 8 * 128 * 4

    partials = pl.pallas_call(
        _puzzle_loss_kernel,
        out_shape=jax.ShapeDtypeStruct((num_tiles, 8, 128), jnp.float32),
        grid=(num_tiles,),
        in_specs=[
            pl.BlockSpec((25, tile_sub, 128), lambda i: (0, i, 0)),
            pl.BlockSpec((25, tile_sub, 128), lambda i: (0, i, 0)),
        ],
        out_specs=pl.BlockSpec((1, 8, 128), lambda i: (i, 0, 0)),
        compiler_params=pltpu.CompilerParams(
            dimension_semantics=("parallel",)),
        cost_estimate=pl.CostEstimate(
            flops=flops, transcendentals=0, bytes_accessed=bytes_accessed),
    )(x, t)

    abs_sum = jnp.sum(partials[:, 0, 0])
    dup_sum = jnp.sum(partials[:, 0, 1])
    oob = jnp.max(partials[:, 0, 2])

    loss1 = abs_sum / jnp.float32(B * 25)
    loss2 = dup_sum / jnp.float32(B) * jnp.float32(0.1)
    return loss1 + loss2 + oob * jnp.float32(1000.0)


def _reference_loss(preds, targets):
    """Pure numpy transcription of the PyTorch module, for verification."""
    preds = np.asarray(preds, dtype=np.float32).reshape(-1)
    targets = np.asarray(targets, dtype=np.float32).reshape(-1)
    loss1 = float(np.mean(np.abs(preds - targets)))
    bs = targets.shape[0] // 25
    total = 0
    for grid_flat in preds.reshape(bs, 25):
        grid = grid_flat.reshape(5, 5)
        for i in range(5):
            seen_row, seen_col = set(), set()
            for j in range(5):
                vr = grid[i][j]
                vc = grid[j][i]
                if vr in seen_row:
                    total += 1
                else:
                    seen_row.add(vr)
                if vc in seen_col:
                    total += 1
                else:
                    seen_col.add(vc)
    loss2 = total / bs * 0.1
    oob = bool(((preds < 0.5) | (preds > 5.5)).any())
    return loss1 + loss2 + (1000 if oob else 0)


if __name__ == "__main__":
    key = jax.random.PRNGKey(0)
    kp, kt = jax.random.split(key)
    B = 2
    # integer-valued puzzle predictions in [1, 5] so duplicates actually occur
    # and everything is inside the [0.5, 5.5] bounds.
    preds = jax.random.randint(kp, (B * 25,), 1, 6).astype(jnp.float32)
    targets = jax.random.randint(kt, (B * 25,), 1, 6)   # int targets, cast inside

    out = jax.jit(custom_puzzle_loss)(preds, targets)
    out = jax.block_until_ready(out)

    ref = _reference_loss(np.asarray(preds), np.asarray(targets))
    assert np.allclose(float(out), ref, rtol=1e-5, atol=1e-5), (float(out), ref)
    print("KERNEL_OK")
</pallas_src>

<mosaic_0001>
module attributes {stable_mosaic.version = 11 : i64} {
  func.func @_puzzle_loss_kernel(%arg0: i32, %arg1: memref<25x8x128xf32, #tpu.memory_space<vmem>>, %arg2: memref<25x8x128xf32, #tpu.memory_space<vmem>>, %arg3: memref<1x8x128xf32, #tpu.memory_space<vmem>>) attributes {dimension_semantics = [#tpu.dimension_semantics<parallel>], iteration_bounds = array<i64: 1>, scalar_prefetch = 0 : i64, scratch_operands = 0 : i64, tpu.core_type = #tpu.core_type<tc>, window_params = [{transform_indices = @transform_0, window_bounds = array<i64: 25, 8, 128>}, {transform_indices = @transform_1, window_bounds = array<i64: 25, 8, 128>}, {transform_indices = @transform_2, window_bounds = array<i64: 1, 8, 128>}]} {
    %c0 = arith.constant 0 : index
    %c0_0 = arith.constant 0 : index
    %c0_1 = arith.constant 0 : index
    %0 = vector.load %arg1[%c0, %c0_0, %c0_1] : memref<25x8x128xf32, #tpu.memory_space<vmem>>, vector<25x8x128xf32>
    %c0_2 = arith.constant 0 : index
    %c0_3 = arith.constant 0 : index
    %c0_4 = arith.constant 0 : index
    %1 = vector.load %arg2[%c0_2, %c0_3, %c0_4] : memref<25x8x128xf32, #tpu.memory_space<vmem>>, vector<25x8x128xf32>
    %2 = arith.subf %0, %1 : vector<25x8x128xf32>
    %3 = math.absf %2 : vector<25x8x128xf32>
    %4 = vector.shape_cast %3 : vector<25x8x128xf32> to vector<1x25x8x128xf32>
    %cst = arith.constant dense<0.000000e+00> : vector<1xf32>
    %5 = vector.multi_reduction <add>, %4, %cst [1, 2, 3] : vector<1x25x8x128xf32> to vector<1xf32>
    %6 = vector.shape_cast %5 : vector<1xf32> to vector<1x1x1x1xf32>
    %7 = vector.extract %6[0, 0, 0, 0] : f32 from vector<1x1x1x1xf32>
    %8 = vector.extract_strided_slice %0 {offsets = [0, 0, 0], sizes = [1, 8, 128], strides = [1, 1, 1]} : vector<25x8x128xf32> to vector<1x8x128xf32>
    %9 = vector.shape_cast %8 : vector<1x8x128xf32> to vector<8x128xf32>
    %10 = vector.extract_strided_slice %0 {offsets = [1, 0, 0], sizes = [1, 8, 128], strides = [1, 1, 1]} : vector<25x8x128xf32> to vector<1x8x128xf32>
    %11 = vector.shape_cast %10 : vector<1x8x128xf32> to vector<8x128xf32>
    %12 = vector.extract_strided_slice %0 {offsets = [2, 0, 0], sizes = [1, 8, 128], strides = [1, 1, 1]} : vector<25x8x128xf32> to vector<1x8x128xf32>
    %13 = vector.shape_cast %12 : vector<1x8x128xf32> to vector<8x128xf32>
    %14 = vector.extract_strided_slice %0 {offsets = [3, 0, 0], sizes = [1, 8, 128], strides = [1, 1, 1]} : vector<25x8x128xf32> to vector<1x8x128xf32>
    %15 = vector.shape_cast %14 : vector<1x8x128xf32> to vector<8x128xf32>
    %16 = vector.extract_strided_slice %0 {offsets = [4, 0, 0], sizes = [1, 8, 128], strides = [1, 1, 1]} : vector<25x8x128xf32> to vector<1x8x128xf32>
    %17 = vector.shape_cast %16 : vector<1x8x128xf32> to vector<8x128xf32>
    %18 = vector.extract_strided_slice %0 {offsets = [5, 0, 0], sizes = [1, 8, 128], strides = [1, 1, 1]} : vector<25x8x128xf32> to vector<1x8x128xf32>
    %19 = vector.shape_cast %18 : vector<1x8x128xf32> to vector<8x128xf32>
    %20 = vector.extract_strided_slice %0 {offsets = [6, 0, 0], sizes = [1, 8, 128], strides = [1, 1, 1]} : vector<25x8x128xf32> to vector<1x8x128xf32>
    %21 = vector.shape_cast %20 : vector<1x8x128xf32> to vector<8x128xf32>
    %22 = vector.extract_strided_slice %0 {offsets = [7, 0, 0], sizes = [1, 8, 128], strides = [1, 1, 1]} : vector<25x8x128xf32> to vector<1x8x128xf32>
    %23 = vector.shape_cast %22 : vector<1x8x128xf32> to vector<8x128xf32>
    %24 = vector.extract_strided_slice %0 {offsets = [8, 0, 0], sizes = [1, 8, 128], strides = [1, 1, 1]} : vector<25x8x128xf32> to vector<1x8x128xf32>
    %25 = vector.shape_cast %24 : vector<1x8x128xf32> to vector<8x128xf32>
    %26 = vector.extract_strided_slice %0 {offsets = [9, 0, 0], sizes = [1, 8, 128], strides = [1, 1, 1]} : vector<25x8x128xf32> to vector<1x8x128xf32>
    %27 = vector.shape_cast %26 : vector<1x8x128xf32> to vector<8x128xf32>
    %28 = vector.extract_strided_slice %0 {offsets = [10, 0, 0], sizes = [1, 8, 128], strides = [1, 1, 1]} : vector<25x8x128xf32> to vector<1x8x128xf32>
    %29 = vector.shape_cast %28 : vector<1x8x128xf32> to vector<8x128xf32>
    %30 = vector.extract_strided_slice %0 {offsets = [11, 0, 0], sizes = [1, 8, 128], strides = [1, 1, 1]} : vector<25x8x128xf32> to vector<1x8x128xf32>
    %31 = vector.shape_cast %30 : vector<1x8x128xf32> to vector<8x128xf32>
    %32 = vector.extract_strided_slice %0 {offsets = [12, 0, 0], sizes = [1, 8, 128], strides = [1, 1, 1]} : vector<25x8x128xf32> to vector<1x8x128xf32>
    %33 = vector.shape_cast %32 : vector<1x8x128xf32> to vector<8x128xf32>
    %34 = vector.extract_strided_slice %0 {offsets = [13, 0, 0], sizes = [1, 8, 128], strides = [1, 1, 1]} : vector<25x8x128xf32> to vector<1x8x128xf32>
    %35 = vector.shape_cast %34 : vector<1x8x128xf32> to vector<8x128xf32>
    %36 = vector.extract_strided_slice %0 {offsets = [14, 0, 0], sizes = [1, 8, 128], strides = [1, 1, 1]} : vector<25x8x128xf32> to vector<1x8x128xf32>
    %37 = vector.shape_cast %36 : vector<1x8x128xf32> to vector<8x128xf32>
    %38 = vector.extract_strided_slice %0 {offsets = [15, 0, 0], sizes = [1, 8, 128], strides = [1, 1, 1]} : vector<25x8x128xf32> to vector<1x8x128xf32>
    %39 = vector.shape_cast %38 : vector<1x8x128xf32> to vector<8x128xf32>
    %40 = vector.extract_strided_slice %0 {offsets = [16, 0, 0], sizes = [1, 8, 128], strides = [1, 1, 1]} : vector<25x8x128xf32> to vector<1x8x128xf32>
    %41 = vector.shape_cast %40 : vector<1x8x128xf32> to vector<8x128xf32>
    %42 = vector.extract_strided_slice %0 {offsets = [17, 0, 0], sizes = [1, 8, 128], strides = [1, 1, 1]} : vector<25x8x128xf32> to vector<1x8x128xf32>
    %43 = vector.shape_cast %42 : vector<1x8x128xf32> to vector<8x128xf32>
    %44 = vector.extract_strided_slice %0 {offsets = [18, 0, 0], sizes = [1, 8, 128], strides = [1, 1, 1]} : vector<25x8x128xf32> to vector<1x8x128xf32>
    %45 = vector.shape_cast %44 : vector<1x8x128xf32> to vector<8x128xf32>
    %46 = vector.extract_strided_slice %0 {offsets = [19, 0, 0], sizes = [1, 8, 128], strides = [1, 1, 1]} : vector<25x8x128xf32> to vector<1x8x128xf32>
    %47 = vector.shape_cast %46 : vector<1x8x128xf32> to vector<8x128xf32>
    %48 = vector.extract_strided_slice %0 {offsets = [20, 0, 0], sizes = [1, 8, 128], strides = [1, 1, 1]} : vector<25x8x128xf32> to vector<1x8x128xf32>
    %49 = vector.shape_cast %48 : vector<1x8x128xf32> to vector<8x128xf32>
    %50 = vector.extract_strided_slice %0 {offsets = [21, 0, 0], sizes = [1, 8, 128], strides = [1, 1, 1]} : vector<25x8x128xf32> to vector<1x8x128xf32>
    %51 = vector.shape_cast %50 : vector<1x8x128xf32> to vector<8x128xf32>
    %52 = vector.extract_strided_slice %0 {offsets = [22, 0, 0], sizes = [1, 8, 128], strides = [1, 1, 1]} : vector<25x8x128xf32> to vector<1x8x128xf32>
    %53 = vector.shape_cast %52 : vector<1x8x128xf32> to vector<8x128xf32>
    %54 = vector.extract_strided_slice %0 {offsets = [23, 0, 0], sizes = [1, 8, 128], strides = [1, 1, 1]} : vector<25x8x128xf32> to vector<1x8x128xf32>
    %55 = vector.shape_cast %54 : vector<1x8x128xf32> to vector<8x128xf32>
    %56 = vector.extract_strided_slice %0 {offsets = [24, 0, 0], sizes = [1, 8, 128], strides = [1, 1, 1]} : vector<25x8x128xf32> to vector<1x8x128xf32>
    %57 = vector.shape_cast %56 : vector<1x8x128xf32> to vector<8x128xf32>
    %cst_5 = arith.constant 0.000000e+00 : f32
    %58 = vector.broadcast %cst_5 : f32 to vector<8x128xf32>
    %59 = arith.cmpf oeq, %11, %9 : vector<8x128xf32>
    %60 = arith.extui %59 : vector<8x128xi1> to vector<8x128xi32>
    %61 = arith.sitofp %60 : vector<8x128xi32> to vector<8x128xf32>
    %62 = arith.addf %58, %61 : vector<8x128xf32>
    %63 = arith.cmpf oeq, %13, %9 : vector<8x128xf32>
    %64 = arith.cmpf oeq, %13, %11 : vector<8x128xf32>
    %65 = arith.ori %63, %64 : vector<8x128xi1>
    %66 = arith.extui %65 : vector<8x128xi1> to vector<8x128xi32>
    %67 = arith.sitofp %66 : vector<8x128xi32> to vector<8x128xf32>
    %68 = arith.addf %62, %67 : vector<8x128xf32>
    %69 = arith.cmpf oeq, %15, %9 : vector<8x128xf32>
    %70 = arith.cmpf oeq, %15, %11 : vector<8x128xf32>
    %71 = arith.ori %69, %70 : vector<8x128xi1>
    %72 = arith.cmpf oeq, %15, %13 : vector<8x128xf32>
    %73 = arith.ori %71, %72 : vector<8x128xi1>
    %74 = arith.extui %73 : vector<8x128xi1> to vector<8x128xi32>
    %75 = arith.sitofp %74 : vector<8x128xi32> to vector<8x128xf32>
    %76 = arith.addf %68, %75 : vector<8x128xf32>
    %77 = arith.cmpf oeq, %17, %9 : vector<8x128xf32>
    %78 = arith.cmpf oeq, %17, %11 : vector<8x128xf32>
    %79 = arith.ori %77, %78 : vector<8x128xi1>
    %80 = arith.cmpf oeq, %17, %13 : vector<8x128xf32>
    %81 = arith.ori %79, %80 : vector<8x128xi1>
    %82 = arith.cmpf oeq, %17, %15 : vector<8x128xf32>
    %83 = arith.ori %81, %82 : vector<8x128xi1>
    %84 = arith.extui %83 : vector<8x128xi1> to vector<8x128xi32>
    %85 = arith.sitofp %84 : vector<8x128xi32> to vector<8x128xf32>
    %86 = arith.addf %76, %85 : vector<8x128xf32>
    %87 = arith.cmpf oeq, %21, %19 : vector<8x128xf32>
    %88 = arith.extui %87 : vector<8x128xi1> to vector<8x128xi32>
    %89 = arith.sitofp %88 : vector<8x128xi32> to vector<8x128xf32>
    %90 = arith.addf %86, %89 : vector<8x128xf32>
    %91 = arith.cmpf oeq, %23, %19 : vector<8x128xf32>
    %92 = arith.cmpf oeq, %23, %21 : vector<8x128xf32>
    %93 = arith.ori %91, %92 : vector<8x128xi1>
    %94 = arith.extui %93 : vector<8x128xi1> to vector<8x128xi32>
    %95 = arith.sitofp %94 : vector<8x128xi32> to vector<8x128xf32>
    %96 = arith.addf %90, %95 : vector<8x128xf32>
    %97 = arith.cmpf oeq, %25, %19 : vector<8x128xf32>
    %98 = arith.cmpf oeq, %25, %21 : vector<8x128xf32>
    %99 = arith.ori %97, %98 : vector<8x128xi1>
    %100 = arith.cmpf oeq, %25, %23 : vector<8x128xf32>
    %101 = arith.ori %99, %100 : vector<8x128xi1>
    %102 = arith.extui %101 : vector<8x128xi1> to vector<8x128xi32>
    %103 = arith.sitofp %102 : vector<8x128xi32> to vector<8x128xf32>
    %104 = arith.addf %96, %103 : vector<8x128xf32>
    %105 = arith.cmpf oeq, %27, %19 : vector<8x128xf32>
    %106 = arith.cmpf oeq, %27, %21 : vector<8x128xf32>
    %107 = arith.ori %105, %106 : vector<8x128xi1>
    %108 = arith.cmpf oeq, %27, %23 : vector<8x128xf32>
    %109 = arith.ori %107, %108 : vector<8x128xi1>
    %110 = arith.cmpf oeq, %27, %25 : vector<8x128xf32>
    %111 = arith.ori %109, %110 : vector<8x128xi1>
    %112 = arith.extui %111 : vector<8x128xi1> to vector<8x128xi32>
    %113 = arith.sitofp %112 : vector<8x128xi32> to vector<8x128xf32>
    %114 = arith.addf %104, %113 : vector<8x128xf32>
    %115 = arith.cmpf oeq, %31, %29 : vector<8x128xf32>
    %116 = arith.extui %115 : vector<8x128xi1> to vector<8x128xi32>
    %117 = arith.sitofp %116 : vector<8x128xi32> to vector<8x128xf32>
    %118 = arith.addf %114, %117 : vector<8x128xf32>
    %119 = arith.cmpf oeq, %33, %29 : vector<8x128xf32>
    %120 = arith.cmpf oeq, %33, %31 : vector<8x128xf32>
    %121 = arith.ori %119, %120 : vector<8x128xi1>
    %122 = arith.extui %121 : vector<8x128xi1> to vector<8x128xi32>
    %123 = arith.sitofp %122 : vector<8x128xi32> to vector<8x128xf32>
    %124 = arith.addf %118, %123 : vector<8x128xf32>
    %125 = arith.cmpf oeq, %35, %29 : vector<8x128xf32>
    %126 = arith.cmpf oeq, %35, %31 : vector<8x128xf32>
    %127 = arith.ori %125, %126 : vector<8x128xi1>
    %128 = arith.cmpf oeq, %35, %33 : vector<8x128xf32>
    %129 = arith.ori %127, %128 : vector<8x128xi1>
    %130 = arith.extui %129 : vector<8x128xi1> to vector<8x128xi32>
    %131 = arith.sitofp %130 : vector<8x128xi32> to vector<8x128xf32>
    %132 = arith.addf %124, %131 : vector<8x128xf32>
    %133 = arith.cmpf oeq, %37, %29 : vector<8x128xf32>
    %134 = arith.cmpf oeq, %37, %31 : vector<8x128xf32>
    %135 = arith.ori %133, %134 : vector<8x128xi1>
    %136 = arith.cmpf oeq, %37, %33 : vector<8x128xf32>
    %137 = arith.ori %135, %136 : vector<8x128xi1>
    %138 = arith.cmpf oeq, %37, %35 : vector<8x128xf32>
    %139 = arith.ori %137, %138 : vector<8x128xi1>
    %140 = arith.extui %139 : vector<8x128xi1> to vector<8x128xi32>
    %141 = arith.sitofp %140 : vector<8x128xi32> to vector<8x128xf32>
    %142 = arith.addf %132, %141 : vector<8x128xf32>
    %143 = arith.cmpf oeq, %41, %39 : vector<8x128xf32>
    %144 = arith.extui %143 : vector<8x128xi1> to vector<8x128xi32>
    %145 = arith.sitofp %144 : vector<8x128xi32> to vector<8x128xf32>
    %146 = arith.addf %142, %145 : vector<8x128xf32>
    %147 = arith.cmpf oeq, %43, %39 : vector<8x128xf32>
    %148 = arith.cmpf oeq, %43, %41 : vector<8x128xf32>
    %149 = arith.ori %147, %148 : vector<8x128xi1>
    %150 = arith.extui %149 : vector<8x128xi1> to vector<8x128xi32>
    %151 = arith.sitofp %150 : vector<8x128xi32> to vector<8x128xf32>
    %152 = arith.addf %146, %151 : vector<8x128xf32>
    %153 = arith.cmpf oeq, %45, %39 : vector<8x128xf32>
    %154 = arith.cmpf oeq, %45, %41 : vector<8x128xf32>
    %155 = arith.ori %153, %154 : vector<8x128xi1>
    %156 = arith.cmpf oeq, %45, %43 : vector<8x128xf32>
    %157 = arith.ori %155, %156 : vector<8x128xi1>
    %158 = arith.extui %157 : vector<8x128xi1> to vector<8x128xi32>
    %159 = arith.sitofp %158 : vector<8x128xi32> to vector<8x128xf32>
    %160 = arith.addf %152, %159 : vector<8x128xf32>
    %161 = arith.cmpf oeq, %47, %39 : vector<8x128xf32>
    %162 = arith.cmpf oeq, %47, %41 : vector<8x128xf32>
    %163 = arith.ori %161, %162 : vector<8x128xi1>
    %164 = arith.cmpf oeq, %47, %43 : vector<8x128xf32>
    %165 = arith.ori %163, %164 : vector<8x128xi1>
    %166 = arith.cmpf oeq, %47, %45 : vector<8x128xf32>
    %167 = arith.ori %165, %166 : vector<8x128xi1>
    %168 = arith.extui %167 : vector<8x128xi1> to vector<8x128xi32>
    %169 = arith.sitofp %168 : vector<8x128xi32> to vector<8x128xf32>
    %170 = arith.addf %160, %169 : vector<8x128xf32>
    %171 = arith.cmpf oeq, %51, %49 : vector<8x128xf32>
    %172 = arith.extui %171 : vector<8x128xi1> to vector<8x128xi32>
    %173 = arith.sitofp %172 : vector<8x128xi32> to vector<8x128xf32>
    %174 = arith.addf %170, %173 : vector<8x128xf32>
    %175 = arith.cmpf oeq, %53, %49 : vector<8x128xf32>
    %176 = arith.cmpf oeq, %53, %51 : vector<8x128xf32>
    %177 = arith.ori %175, %176 : vector<8x128xi1>
    %178 = arith.extui %177 : vector<8x128xi1> to vector<8x128xi32>
    %179 = arith.sitofp %178 : vector<8x128xi32> to vector<8x128xf32>
    %180 = arith.addf %174, %179 : vector<8x128xf32>
    %181 = arith.cmpf oeq, %55, %49 : vector<8x128xf32>
    %182 = arith.cmpf oeq, %55, %51 : vector<8x128xf32>
    %183 = arith.ori %181, %182 : vector<8x128xi1>
    %184 = arith.cmpf oeq, %55, %53 : vector<8x128xf32>
    %185 = arith.ori %183, %184 : vector<8x128xi1>
    %186 = arith.extui %185 : vector<8x128xi1> to vector<8x128xi32>
    %187 = arith.sitofp %186 : vector<8x128xi32> to vector<8x128xf32>
    %188 = arith.addf %180, %187 : vector<8x128xf32>
    %189 = arith.cmpf oeq, %57, %49 : vector<8x128xf32>
    %190 = arith.cmpf oeq, %57, %51 : vector<8x128xf32>
    %191 = arith.ori %189, %190 : vector<8x128xi1>
    %192 = arith.cmpf oeq, %57, %53 : vector<8x128xf32>
    %193 = arith.ori %191, %192 : vector<8x128xi1>
    %194 = arith.cmpf oeq, %57, %55 : vector<8x128xf32>
    %195 = arith.ori %193, %194 : vector<8x128xi1>
    %196 = arith.extui %195 : vector<8x128xi1> to vector<8x128xi32>
    %197 = arith.sitofp %196 : vector<8x128xi32> to vector<8x128xf32>
    %198 = arith.addf %188, %197 : vector<8x128xf32>
    %199 = arith.cmpf oeq, %19, %9 : vector<8x128xf32>
    %200 = arith.extui %199 : vector<8x128xi1> to vector<8x128xi32>
    %201 = arith.sitofp %200 : vector<8x128xi32> to vector<8x128xf32>
    %202 = arith.addf %198, %201 : vector<8x128xf32>
    %203 = arith.cmpf oeq, %29, %9 : vector<8x128xf32>
    %204 = arith.cmpf oeq, %29, %19 : vector<8x128xf32>
    %205 = arith.ori %203, %204 : vector<8x128xi1>
    %206 = arith.extui %205 : vector<8x128xi1> to vector<8x128xi32>
    %207 = arith.sitofp %206 : vector<8x128xi32> to vector<8x128xf32>
    %208 = arith.addf %202, %207 : vector<8x128xf32>
    %209 = arith.cmpf oeq, %39, %9 : vector<8x128xf32>
    %210 = arith.cmpf oeq, %39, %19 : vector<8x128xf32>
    %211 = arith.ori %209, %210 : vector<8x128xi1>
    %212 = arith.cmpf oeq, %39, %29 : vector<8x128xf32>
    %213 = arith.ori %211, %212 : vector<8x128xi1>
    %214 = arith.extui %213 : vector<8x128xi1> to vector<8x128xi32>
    %215 = arith.sitofp %214 : vector<8x128xi32> to vector<8x128xf32>
    %216 = arith.addf %208, %215 : vector<8x128xf32>
    %217 = arith.cmpf oeq, %49, %9 : vector<8x128xf32>
    %218 = arith.cmpf oeq, %49, %19 : vector<8x128xf32>
    %219 = arith.ori %217, %218 : vector<8x128xi1>
    %220 = arith.cmpf oeq, %49, %29 : vector<8x128xf32>
    %221 = arith.ori %219, %220 : vector<8x128xi1>
    %222 = arith.cmpf oeq, %49, %39 : vector<8x128xf32>
    %223 = arith.ori %221, %222 : vector<8x128xi1>
    %224 = arith.extui %223 : vector<8x128xi1> to vector<8x128xi32>
    %225 = arith.sitofp %224 : vector<8x128xi32> to vector<8x128xf32>
    %226 = arith.addf %216, %225 : vector<8x128xf32>
    %227 = arith.cmpf oeq, %21, %11 : vector<8x128xf32>
    %228 = arith.extui %227 : vector<8x128xi1> to vector<8x128xi32>
    %229 = arith.sitofp %228 : vector<8x128xi32> to vector<8x128xf32>
    %230 = arith.addf %226, %229 : vector<8x128xf32>
    %231 = arith.cmpf oeq, %31, %11 : vector<8x128xf32>
    %232 = arith.cmpf oeq, %31, %21 : vector<8x128xf32>
    %233 = arith.ori %231, %232 : vector<8x128xi1>
    %234 = arith.extui %233 : vector<8x128xi1> to vector<8x128xi32>
    %235 = arith.sitofp %234 : vector<8x128xi32> to vector<8x128xf32>
    %236 = arith.addf %230, %235 : vector<8x128xf32>
    %237 = arith.cmpf oeq, %41, %11 : vector<8x128xf32>
    %238 = arith.cmpf oeq, %41, %21 : vector<8x128xf32>
    %239 = arith.ori %237, %238 : vector<8x128xi1>
    %240 = arith.cmpf oeq, %41, %31 : vector<8x128xf32>
    %241 = arith.ori %239, %240 : vector<8x128xi1>
    %242 = arith.extui %241 : vector<8x128xi1> to vector<8x128xi32>
    %243 = arith.sitofp %242 : vector<8x128xi32> to vector<8x128xf32>
    %244 = arith.addf %236, %243 : vector<8x128xf32>
    %245 = arith.cmpf oeq, %51, %11 : vector<8x128xf32>
    %246 = arith.cmpf oeq, %51, %21 : vector<8x128xf32>
    %247 = arith.ori %245, %246 : vector<8x128xi1>
    %248 = arith.cmpf oeq, %51, %31 : vector<8x128xf32>
    %249 = arith.ori %247, %248 : vector<8x128xi1>
    %250 = arith.cmpf oeq, %51, %41 : vector<8x128xf32>
    %251 = arith.ori %249, %250 : vector<8x128xi1>
    %252 = arith.extui %251 : vector<8x128xi1> to vector<8x128xi32>
    %253 = arith.sitofp %252 : vector<8x128xi32> to vector<8x128xf32>
    %254 = arith.addf %244, %253 : vector<8x128xf32>
    %255 = arith.cmpf oeq, %23, %13 : vector<8x128xf32>
    %256 = arith.extui %255 : vector<8x128xi1> to vector<8x128xi32>
    %257 = arith.sitofp %256 : vector<8x128xi32> to vector<8x128xf32>
    %258 = arith.addf %254, %257 : vector<8x128xf32>
    %259 = arith.cmpf oeq, %33, %13 : vector<8x128xf32>
    %260 = arith.cmpf oeq, %33, %23 : vector<8x128xf32>
    %261 = arith.ori %259, %260 : vector<8x128xi1>
    %262 = arith.extui %261 : vector<8x128xi1> to vector<8x128xi32>
    %263 = arith.sitofp %262 : vector<8x128xi32> to vector<8x128xf32>
    %264 = arith.addf %258, %263 : vector<8x128xf32>
    %265 = arith.cmpf oeq, %43, %13 : vector<8x128xf32>
    %266 = arith.cmpf oeq, %43, %23 : vector<8x128xf32>
    %267 = arith.ori %265, %266 : vector<8x128xi1>
    %268 = arith.cmpf oeq, %43, %33 : vector<8x128xf32>
    %269 = arith.ori %267, %268 : vector<8x128xi1>
    %270 = arith.extui %269 : vector<8x128xi1> to vector<8x128xi32>
    %271 = arith.sitofp %270 : vector<8x128xi32> to vector<8x128xf32>
    %272 = arith.addf %264, %271 : vector<8x128xf32>
    %273 = arith.cmpf oeq, %53, %13 : vector<8x128xf32>
    %274 = arith.cmpf oeq, %53, %23 : vector<8x128xf32>
    %275 = arith.ori %273, %274 : vector<8x128xi1>
    %276 = arith.cmpf oeq, %53, %33 : vector<8x128xf32>
    %277 = arith.ori %275, %276 : vector<8x128xi1>
    %278 = arith.cmpf oeq, %53, %43 : vector<8x128xf32>
    %279 = arith.ori %277, %278 : vector<8x128xi1>
    %280 = arith.extui %279 : vector<8x128xi1> to vector<8x128xi32>
    %281 = arith.sitofp %280 : vector<8x128xi32> to vector<8x128xf32>
    %282 = arith.addf %272, %281 : vector<8x128xf32>
    %283 = arith.cmpf oeq, %25, %15 : vector<8x128xf32>
    %284 = arith.extui %283 : vector<8x128xi1> to vector<8x128xi32>
    %285 = arith.sitofp %284 : vector<8x128xi32> to vector<8x128xf32>
    %286 = arith.addf %282, %285 : vector<8x128xf32>
    %287 = arith.cmpf oeq, %35, %15 : vector<8x128xf32>
    %288 = arith.cmpf oeq, %35, %25 : vector<8x128xf32>
    %289 = arith.ori %287, %288 : vector<8x128xi1>
    %290 = arith.extui %289 : vector<8x128xi1> to vector<8x128xi32>
    %291 = arith.sitofp %290 : vector<8x128xi32> to vector<8x128xf32>
    %292 = arith.addf %286, %291 : vector<8x128xf32>
    %293 = arith.cmpf oeq, %45, %15 : vector<8x128xf32>
    %294 = arith.cmpf oeq, %45, %25 : vector<8x128xf32>
    %295 = arith.ori %293, %294 : vector<8x128xi1>
    %296 = arith.cmpf oeq, %45, %35 : vector<8x128xf32>
    %297 = arith.ori %295, %296 : vector<8x128xi1>
    %298 = arith.extui %297 : vector<8x128xi1> to vector<8x128xi32>
    %299 = arith.sitofp %298 : vector<8x128xi32> to vector<8x128xf32>
    %300 = arith.addf %292, %299 : vector<8x128xf32>
    %301 = arith.cmpf oeq, %55, %15 : vector<8x128xf32>
    %302 = arith.cmpf oeq, %55, %25 : vector<8x128xf32>
    %303 = arith.ori %301, %302 : vector<8x128xi1>
    %304 = arith.cmpf oeq, %55, %35 : vector<8x128xf32>
    %305 = arith.ori %303, %304 : vector<8x128xi1>
    %306 = arith.cmpf oeq, %55, %45 : vector<8x128xf32>
    %307 = arith.ori %305, %306 : vector<8x128xi1>
    %308 = arith.extui %307 : vector<8x128xi1> to vector<8x128xi32>
    %309 = arith.sitofp %308 : vector<8x128xi32> to vector<8x128xf32>
    %310 = arith.addf %300, %309 : vector<8x128xf32>
    %311 = arith.cmpf oeq, %27, %17 : vector<8x128xf32>
    %312 = arith.extui %311 : vector<8x128xi1> to vector<8x128xi32>
    %313 = arith.sitofp %312 : vector<8x128xi32> to vector<8x128xf32>
    %314 = arith.addf %310, %313 : vector<8x128xf32>
    %315 = arith.cmpf oeq, %37, %17 : vector<8x128xf32>
    %316 = arith.cmpf oeq, %37, %27 : vector<8x128xf32>
    %317 = arith.ori %315, %316 : vector<8x128xi1>
    %318 = arith.extui %317 : vector<8x128xi1> to vector<8x128xi32>
    %319 = arith.sitofp %318 : vector<8x128xi32> to vector<8x128xf32>
    %320 = arith.addf %314, %319 : vector<8x128xf32>
    %321 = arith.cmpf oeq, %47, %17 : vector<8x128xf32>
    %322 = arith.cmpf oeq, %47, %27 : vector<8x128xf32>
    %323 = arith.ori %321, %322 : vector<8x128xi1>
    %324 = arith.cmpf oeq, %47, %37 : vector<8x128xf32>
    %325 = arith.ori %323, %324 : vector<8x128xi1>
    %326 = arith.extui %325 : vector<8x128xi1> to vector<8x128xi32>
    %327 = arith.sitofp %326 : vector<8x128xi32> to vector<8x128xf32>
    %328 = arith.addf %320, %327 : vector<8x128xf32>
    %329 = arith.cmpf oeq, %57, %17 : vector<8x128xf32>
    %330 = arith.cmpf oeq, %57, %27 : vector<8x128xf32>
    %331 = arith.ori %329, %330 : vector<8x128xi1>
    %332 = arith.cmpf oeq, %57, %37 : vector<8x128xf32>
    %333 = arith.ori %331, %332 : vector<8x128xi1>
    %334 = arith.cmpf oeq, %57, %47 : vector<8x128xf32>
    %335 = arith.ori %333, %334 : vector<8x128xi1>
    %336 = arith.extui %335 : vector<8x128xi1> to vector<8x128xi32>
    %337 = arith.sitofp %336 : vector<8x128xi32> to vector<8x128xf32>
    %338 = arith.addf %328, %337 : vector<8x128xf32>
    %339 = vector.shape_cast %338 : vector<8x128xf32> to vector<1x8x128xf32>
    %cst_6 = arith.constant dense<0.000000e+00> : vector<1xf32>
    %340 = vector.multi_reduction <add>, %339, %cst_6 [1, 2] : vector<1x8x128xf32> to vector<1xf32>
    %341 = vector.shape_cast %340 : vector<1xf32> to vector<1x1x1xf32>
    %342 = vector.extract %341[0, 0, 0] : f32 from vector<1x1x1xf32>
    %cst_7 = arith.constant 5.000000e-01 : f32
    %343 = vector.broadcast %cst_7 : f32 to vector<25x8x128xf32>
    %344 = arith.cmpf olt, %0, %343 : vector<25x8x128xf32>
    %cst_8 = arith.constant 5.500000e+00 : f32
    %345 = vector.broadcast %cst_8 : f32 to vector<25x8x128xf32>
    %346 = arith.cmpf ogt, %0, %345 : vector<25x8x128xf32>
    %347 = arith.ori %344, %346 : vector<25x8x128xi1>
    %348 = arith.extui %347 : vector<25x8x128xi1> to vector<25x8x128xi32>
    %349 = arith.sitofp %348 : vector<25x8x128xi32> to vector<25x8x128xf32>
    %350 = vector.shape_cast %349 : vector<25x8x128xf32> to vector<1x25x8x128xf32>
    %cst_9 = arith.constant dense<0xFF800000> : vector<1xf32>
    %351 = vector.multi_reduction <maximumf>, %350, %cst_9 [1, 2, 3] : vector<1x25x8x128xf32> to vector<1xf32>
    %352 = vector.shape_cast %351 : vector<1xf32> to vector<1x1x1x1xf32>
    %353 = vector.extract %352[0, 0, 0, 0] : f32 from vector<1x1x1x1xf32>
    %354 = tpu.iota {dimensions = array<i32: 2>} : vector<1x8x128xi32>
    %c0_i32 = arith.constant 0 : i32
    %355 = vector.broadcast %c0_i32 : i32 to vector<1x8x128xi32>
    %356 = arith.cmpi eq, %354, %355 : vector<1x8x128xi32>
    %c1_i32 = arith.constant 1 : i32
    %357 = vector.broadcast %c1_i32 : i32 to vector<1x8x128xi32>
    %358 = arith.cmpi eq, %354, %357 : vector<1x8x128xi32>
    %c2_i32 = arith.constant 2 : i32
    %359 = vector.broadcast %c2_i32 : i32 to vector<1x8x128xi32>
    %360 = arith.cmpi eq, %354, %359 : vector<1x8x128xi32>
    %cst_10 = arith.constant 0.000000e+00 : f32
    %361 = vector.broadcast %353 : f32 to vector<1x8x128xf32>
    %362 = vector.broadcast %cst_10 : f32 to vector<1x8x128xf32>
    %363 = arith.select %360, %361, %362 : vector<1x8x128xi1>, vector<1x8x128xf32>
    %364 = vector.broadcast %342 : f32 to vector<1x8x128xf32>
    %365 = arith.select %358, %364, %363 : vector<1x8x128xi1>, vector<1x8x128xf32>
    %366 = vector.broadcast %7 : f32 to vector<1x8x128xf32>
    %367 = arith.select %356, %366, %365 : vector<1x8x128xi1>, vector<1x8x128xf32>
    %c0_11 = arith.constant 0 : index
    %c0_12 = arith.constant 0 : index
    %c0_13 = arith.constant 0 : index
    %368 = vector.load %arg3[%c0_11, %c0_12, %c0_13] : memref<1x8x128xf32, #tpu.memory_space<vmem>>, vector<1x8x128xf32>
    tpu.vector_store %arg3[%c0_11, %c0_12, %c0_13], %367 {strides = array<i32>} : memref<1x8x128xf32, #tpu.memory_space<vmem>>, vector<1x8x128xf32>,
    return
  }
  func.func @transform_0(%arg0: i32) -> (i32, i32, i32) {
    %c0_i32 = arith.constant 0 : i32
    %c0_i32_0 = arith.constant 0 : i32
    %c0_i32_1 = arith.constant 0 : i32
    return %c0_i32, %arg0, %c0_i32_0 : i32, i32, i32
  }
  func.func @transform_1(%arg0: i32) -> (i32, i32, i32) {
    %c0_i32 = arith.constant 0 : i32
    %c0_i32_0 = arith.constant 0 : i32
    %c0_i32_1 = arith.constant 0 : i32
    return %c0_i32, %arg0, %c0_i32_0 : i32, i32, i32
  }
  func.func @transform_2(%arg0: i32) -> (i32, i32, i32) {
    %c0_i32 = arith.constant 0 : i32
    %c0_i32_0 = arith.constant 0 : i32
    %c0_i32_1 = arith.constant 0 : i32
    return %arg0, %c0_i32, %c0_i32_0 : i32, i32, i32
  }
}

</mosaic_0001>

<llo_original>
// kernel: custom_puzzle_loss.1
$region0: #{custom_puzzle_loss.1}
  #allocation0 [shape = 'u32[]', space=smem, size = 0x4, offset = 0x4, fixed_abs, tag = 'smem constant byte address 0x4 - core index']
  #allocation1 [shape = 'u32[72,128]{1,0:T(1,128)}', space=vmem, size = 0x9000, scoped, tag = 'internal scratch']
  %s0 = inlined_call_operand.vmem [shape: f32[25,8,128], index: 0, kind: input, shape index: {}]
  %s1 = inlined_call_operand.vmem [shape: f32[25,8,128], index: 1, kind: input, shape index: {}]
  %s2 = inlined_call_operand.vmem [shape: f32[1,8,128], index: 2, kind: output, shape index: {}]
  %s3 = sld [smem:[#allocation0]]
  $region18: #{custom_puzzle_loss.1} parent=0
    _
  %s5 = ssub.s32 1, %s3
  %s6 = scalar_select 0, %s5, %s3
  // Predicated region
  $region2: #{custom_puzzle_loss.1} parent=0 // pred_check
    _
  $region3: #{custom_puzzle_loss.1} parent=0 // pred_check_branch
    %8 = sbr.rel (0) target = $region5
  $region4: #{custom_puzzle_loss.1} parent=0 // pred_region
    _
  $region5: #{custom_puzzle_loss.1} parent=0 // pred_fallthru
    _
  // Predicated region
  $region6: #{custom_puzzle_loss.1} parent=0 // pred_check
    _
  $region7: #{custom_puzzle_loss.1} parent=0 // pred_check_branch
    %10 = sbr.rel (0) target = $region9
  $region8: #{custom_puzzle_loss.1} parent=0 // pred_region
    _
  $region9: #{custom_puzzle_loss.1} parent=0 // pred_fallthru
    _
  %v11 = vld [vmem:[%s0] sm:$0xff]
  %v12 = vld [vmem:[%s0 + $0x8] sm:$0xff]
  %v13 = vld [vmem:[%s0 + $0x10] sm:$0xff]
  %v14 = vld [vmem:[%s0 + $0x18] sm:$0xff]
  %v15 = vld [vmem:[%s0 + $0x20] sm:$0xff]
  %v16 = vld [vmem:[%s0 + $0x28] sm:$0xff]
  %v17 = vld [vmem:[%s0 + $0x30] sm:$0xff]
  %v18 = vld [vmem:[%s0 + $0x38] sm:$0xff]
  %v19 = vld [vmem:[%s0 + $0x40] sm:$0xff]
  %v20 = vld [vmem:[%s0 + $0x48] sm:$0xff]
  %v21 = vld [vmem:[%s0 + $0x50] sm:$0xff]
  %v22 = vld [vmem:[%s0 + $0x58] sm:$0xff]
  %v23 = vld [vmem:[%s0 + $0x60] sm:$0xff]
  %v24 = vld [vmem:[%s0 + $0x68] sm:$0xff]
  %v25 = vld [vmem:[%s0 + $0x70] sm:$0xff]
  %v26 = vld [vmem:[%s0 + $0x78] sm:$0xff]
  %v27 = vld [vmem:[%s0 + $0x80] sm:$0xff]
  %v28 = vld [vmem:[%s0 + $0x88] sm:$0xff]
  %v29 = vld [vmem:[%s0 + $0x90] sm:$0xff]
  %v30 = vld [vmem:[%s0 + $0x98] sm:$0xff]
  %v31 = vld [vmem:[%s0 + $0xa0] sm:$0xff]
  %v32 = vld [vmem:[%s0 + $0xa8] sm:$0xff]
  %v33 = vld [vmem:[%s0 + $0xb0] sm:$0xff]
  %v34 = vld [vmem:[%s0 + $0xb8] sm:$0xff]
  %v35 = vld [vmem:[%s0 + $0xc0] sm:$0xff]
  %v36 = vld [vmem:[%s1] sm:$0xff]
  %v37 = vld [vmem:[%s1 + $0x8] sm:$0xff]
  %v38 = vld [vmem:[%s1 + $0x10] sm:$0xff]
  %v39 = vld [vmem:[%s1 + $0x18] sm:$0xff]
  %v40 = vld [vmem:[%s1 + $0x20] sm:$0xff]
  %v41 = vld [vmem:[%s1 + $0x28] sm:$0xff]
  %v42 = vld [vmem:[%s1 + $0x30] sm:$0xff]
  %v43 = vld [vmem:[%s1 + $0x38] sm:$0xff]
  %v44 = vld [vmem:[%s1 + $0x40] sm:$0xff]
  %v45 = vld [vmem:[%s1 + $0x48] sm:$0xff]
  %v46 = vld [vmem:[%s1 + $0x50] sm:$0xff]
  %v47 = vld [vmem:[%s1 + $0x58] sm:$0xff]
  %v48 = vld [vmem:[%s1 + $0x60] sm:$0xff]
  %v49 = vld [vmem:[%s1 + $0x68] sm:$0xff]
  %v50 = vld [vmem:[%s1 + $0x70] sm:$0xff]
  %v51 = vld [vmem:[%s1 + $0x78] sm:$0xff]
  %v52 = vld [vmem:[%s1 + $0x80] sm:$0xff]
  %v53 = vld [vmem:[%s1 + $0x88] sm:$0xff]
  %v54 = vld [vmem:[%s1 + $0x90] sm:$0xff]
  %v55 = vld [vmem:[%s1 + $0x98] sm:$0xff]
  %v56 = vld [vmem:[%s1 + $0xa0] sm:$0xff]
  %v57 = vld [vmem:[%s1 + $0xa8] sm:$0xff]
  %v58 = vld [vmem:[%s1 + $0xb0] sm:$0xff]
  %v59 = vld [vmem:[%s1 + $0xb8] sm:$0xff]
  %v60 = vld [vmem:[%s1 + $0xc0] sm:$0xff]
  %v61 = vsub.f32 %v11, %v36
  %v62 = vsub.f32 %v12, %v37
  %v63 = vsub.f32 %v13, %v38
  %v64 = vsub.f32 %v14, %v39
  %v65 = vsub.f32 %v15, %v40
  %v66 = vsub.f32 %v16, %v41
  %v67 = vsub.f32 %v17, %v42
  %v68 = vsub.f32 %v18, %v43
  %v69 = vsub.f32 %v19, %v44
  %v70 = vsub.f32 %v20, %v45
  %v71 = vsub.f32 %v21, %v46
  %v72 = vsub.f32 %v22, %v47
  %v73 = vsub.f32 %v23, %v48
  %v74 = vsub.f32 %v24, %v49
  %v75 = vsub.f32 %v25, %v50
  %v76 = vsub.f32 %v26, %v51
  %v77 = vsub.f32 %v27, %v52
  %v78 = vsub.f32 %v28, %v53
  %v79 = vsub.f32 %v29, %v54
  %v80 = vsub.f32 %v30, %v55
  %v81 = vsub.f32 %v31, %v56
  %v82 = vsub.f32 %v32, %v57
  %v83 = vsub.f32 %v33, %v58
  %v84 = vsub.f32 %v34, %v59
  %v85 = vsub.f32 %v35, %v60
  %v86 = vand.u32 2147483647, %v61
  %v87 = vand.u32 2147483647, %v62
  %v88 = vand.u32 2147483647, %v63
  %v89 = vand.u32 2147483647, %v64
  %v90 = vand.u32 2147483647, %v65
  %v91 = vand.u32 2147483647, %v66
  %v92 = vand.u32 2147483647, %v67
  %v93 = vand.u32 2147483647, %v68
  %v94 = vand.u32 2147483647, %v69
  %v95 = vand.u32 2147483647, %v70
  %v96 = vand.u32 2147483647, %v71
  %v97 = vand.u32 2147483647, %v72
  %v98 = vand.u32 2147483647, %v73
  %v99 = vand.u32 2147483647, %v74
  %v100 = vand.u32 2147483647, %v75
  %v101 = vand.u32 2147483647, %v76
  %v102 = vand.u32 2147483647, %v77
  %v103 = vand.u32 2147483647, %v78
  %v104 = vand.u32 2147483647, %v79
  %v105 = vand.u32 2147483647, %v80
  %v106 = vand.u32 2147483647, %v81
  %v107 = vand.u32 2147483647, %v82
  %v108 = vand.u32 2147483647, %v83
  %v109 = vand.u32 2147483647, %v84
  %v110 = vand.u32 2147483647, %v85
  %v111 = vadd.f32 %v86, %v87
  %v112 = vadd.f32 %v111, %v88
  %v113 = vadd.f32 %v112, %v89
  %v114 = vadd.f32 %v113, %v90
  %v115 = vadd.f32 %v114, %v91
  %v116 = vadd.f32 %v115, %v92
  %v117 = vadd.f32 %v116, %v93
  %v118 = vadd.f32 %v117, %v94
  %v119 = vadd.f32 %v118, %v95
  %v120 = vadd.f32 %v119, %v96
  %v121 = vadd.f32 %v120, %v97
  %v122 = vadd.f32 %v121, %v98
  %v123 = vadd.f32 %v122, %v99
  %v124 = vadd.f32 %v123, %v100
  %v125 = vadd.f32 %v124, %v101
  %v126 = vadd.f32 %v125, %v102
  %v127 = vadd.f32 %v126, %v103
  %v128 = vadd.f32 %v127, %v104
  %v129 = vadd.f32 %v128, %v105
  %v130 = vadd.f32 %v129, %v106
  %v131 = vadd.f32 %v130, %v107
  %v132 = vadd.f32 %v131, %v108
  %v133 = vadd.f32 %v132, %v109
  %v134 = vadd.f32 %v133, %v110
  %135 = vadd.xlane.f32.xlu0 %v134
  %v136 = vpop.xlane.xlu0 %135
  %v137 = vrot.slane %v136, 4
  %v138 = vadd.f32 %v136, %v137
  %v139 = vrot.slane %v138, 2
  %v140 = vadd.f32 %v138, %v139
  %v141 = vrot.slane %v140, 1
  %v142 = vadd.f32 %v140, %v141
  %s143 = vtos %v142
  %vm144 = vcmp.eq.f32.partialorder %v12, %v11
  %v145 = vsel %vm144, 1, 0
  %v146 = vcvt.s32.f32 %v145
  %v147 = vadd.f32 %v146, 0.0
  %vm148 = vcmp.eq.f32.partialorder %v13, %v11
  %vm149 = vcmp.eq.f32.partialorder %v13, %v12
  %vm150 = vmor %vm148, %vm149
  %v151 = vsel %vm150, 1, 0
  %v152 = vcvt.s32.f32 %v151
  %v153 = vadd.f32 %v147, %v152
  %vm154 = vcmp.eq.f32.partialorder %v14, %v11
  %vm155 = vcmp.eq.f32.partialorder %v14, %v12
  %vm156 = vmor %vm154, %vm155
  %vm157 = vcmp.eq.f32.partialorder %v14, %v13
  %vm158 = vmor %vm156, %vm157
  %v159 = vsel %vm158, 1, 0
  %v160 = vcvt.s32.f32 %v159
  %v161 = vadd.f32 %v153, %v160
  %vm162 = vcmp.eq.f32.partialorder %v15, %v11
  %vm163 = vcmp.eq.f32.partialorder %v15, %v12
  %vm164 = vmor %vm162, %vm163
  %vm165 = vcmp.eq.f32.partialorder %v15, %v13
  %vm166 = vmor %vm164, %vm165
  %vm167 = vcmp.eq.f32.partialorder %v15, %v14
  %vm168 = vmor %vm166, %vm167
  %v169 = vsel %vm168, 1, 0
  %v170 = vcvt.s32.f32 %v169
  %v171 = vadd.f32 %v161, %v170
  %vm172 = vcmp.eq.f32.partialorder %v17, %v16
  %v173 = vsel %vm172, 1, 0
  %v174 = vcvt.s32.f32 %v173
  %v175 = vadd.f32 %v171, %v174
  %vm176 = vcmp.eq.f32.partialorder %v18, %v16
  %vm177 = vcmp.eq.f32.partialorder %v18, %v17
  %vm178 = vmor %vm176, %vm177
  %v179 = vsel %vm178, 1, 0
  %v180 = vcvt.s32.f32 %v179
  %v181 = vadd.f32 %v175, %v180
  %vm182 = vcmp.eq.f32.partialorder %v19, %v16
  %vm183 = vcmp.eq.f32.partialorder %v19, %v17
  %vm184 = vmor %vm182, %vm183
  %vm185 = vcmp.eq.f32.partialorder %v19, %v18
  %vm186 = vmor %vm184, %vm185
  %v187 = vsel %vm186, 1, 0
  %v188 = vcvt.s32.f32 %v187
  %v189 = vadd.f32 %v181, %v188
  %vm190 = vcmp.eq.f32.partialorder %v20, %v16
  %vm191 = vcmp.eq.f32.partialorder %v20, %v17
  %vm192 = vmor %vm190, %vm191
  %vm193 = vcmp.eq.f32.partialorder %v20, %v18
  %vm194 = vmor %vm192, %vm193
  %vm195 = vcmp.eq.f32.partialorder %v20, %v19
  %vm196 = vmor %vm194, %vm195
  %v197 = vsel %vm196, 1, 0
  %v198 = vcvt.s32.f32 %v197
  %v199 = vadd.f32 %v189, %v198
  %vm200 = vcmp.eq.f32.partialorder %v22, %v21
  %v201 = vsel %vm200, 1, 0
  %v202 = vcvt.s32.f32 %v201
  %v203 = vadd.f32 %v199, %v202
  %vm204 = vcmp.eq.f32.partialorder %v23, %v21
  %vm205 = vcmp.eq.f32.partialorder %v23, %v22
  %vm206 = vmor %vm204, %vm205
  %v207 = vsel %vm206, 1, 0
  %v208 = vcvt.s32.f32 %v207
  %v209 = vadd.f32 %v203, %v208
  %vm210 = vcmp.eq.f32.partialorder %v24, %v21
  %vm211 = vcmp.eq.f32.partialorder %v24, %v22
  %vm212 = vmor %vm210, %vm211
  %vm213 = vcmp.eq.f32.partialorder %v24, %v23
  %vm214 = vmor %vm212, %vm213
  %v215 = vsel %vm214, 1, 0
  %v216 = vcvt.s32.f32 %v215
  %v217 = vadd.f32 %v209, %v216
  %vm218 = vcmp.eq.f32.partialorder %v25, %v21
  %vm219 = vcmp.eq.f32.partialorder %v25, %v22
  %vm220 = vmor %vm218, %vm219
  %vm221 = vcmp.eq.f32.partialorder %v25, %v23
  %vm222 = vmor %vm220, %vm221
  %vm223 = vcmp.eq.f32.partialorder %v25, %v24
  %vm224 = vmor %vm222, %vm223
  %v225 = vsel %vm224, 1, 0
  %v226 = vcvt.s32.f32 %v225
  %v227 = vadd.f32 %v217, %v226
  %vm228 = vcmp.eq.f32.partialorder %v27, %v26
  %v229 = vsel %vm228, 1, 0
  %v230 = vcvt.s32.f32 %v229
  %v231 = vadd.f32 %v227, %v230
  %vm232 = vcmp.eq.f32.partialorder %v28, %v26
  %vm233 = vcmp.eq.f32.partialorder %v28, %v27
  %vm234 = vmor %vm232, %vm233
  %v235 = vsel %vm234, 1, 0
  %v236 = vcvt.s32.f32 %v235
  %v237 = vadd.f32 %v231, %v236
  %vm238 = vcmp.eq.f32.partialorder %v29, %v26
  %vm239 = vcmp.eq.f32.partialorder %v29, %v27
  %vm240 = vmor %vm238, %vm239
  %vm241 = vcmp.eq.f32.partialorder %v29, %v28
  %vm242 = vmor %vm240, %vm241
  %v243 = vsel %vm242, 1, 0
  %v244 = vcvt.s32.f32 %v243
  %v245 = vadd.f32 %v237, %v244
  %vm246 = vcmp.eq.f32.partialorder %v30, %v26
  %vm247 = vcmp.eq.f32.partialorder %v30, %v27
  %vm248 = vmor %vm246, %vm247
  %vm249 = vcmp.eq.f32.partialorder %v30, %v28
  %vm250 = vmor %vm248, %vm249
  %vm251 = vcmp.eq.f32.partialorder %v30, %v29
  %vm252 = vmor %vm250, %vm251
  %v253 = vsel %vm252, 1, 0
  %v254 = vcvt.s32.f32 %v253
  %v255 = vadd.f32 %v245, %v254
  %vm256 = vcmp.eq.f32.partialorder %v32, %v31
  %v257 = vsel %vm256, 1, 0
  %v258 = vcvt.s32.f32 %v257
  %v259 = vadd.f32 %v255, %v258
  %vm260 = vcmp.eq.f32.partialorder %v33, %v31
  %vm261 = vcmp.eq.f32.partialorder %v33, %v32
  %vm262 = vmor %vm260, %vm261
  %v263 = vsel %vm262, 1, 0
  %v264 = vcvt.s32.f32 %v263
  %v265 = vadd.f32 %v259, %v264
  %vm266 = vcmp.eq.f32.partialorder %v34, %v31
  %vm267 = vcmp.eq.f32.partialorder %v34, %v32
  %vm268 = vmor %vm266, %vm267
  %vm269 = vcmp.eq.f32.partialorder %v34, %v33
  %vm270 = vmor %vm268, %vm269
  %v271 = vsel %vm270, 1, 0
  %v272 = vcvt.s32.f32 %v271
  %v273 = vadd.f32 %v265, %v272
  %vm274 = vcmp.eq.f32.partialorder %v35, %v31
  %vm275 = vcmp.eq.f32.partialorder %v35, %v32
  %vm276 = vmor %vm274, %vm275
  %vm277 = vcmp.eq.f32.partialorder %v35, %v33
  %vm278 = vmor %vm276, %vm277
  %vm279 = vcmp.eq.f32.partialorder %v35, %v34
  %vm280 = vmor %vm278, %vm279
  %v281 = vsel %vm280, 1, 0
  %v282 = vcvt.s32.f32 %v281
  %v283 = vadd.f32 %v273, %v282
  %vm284 = vcmp.eq.f32.partialorder %v16, %v11
  %v285 = vsel %vm284, 1, 0
  %v286 = vcvt.s32.f32 %v285
  %v287 = vadd.f32 %v283, %v286
  %vm288 = vcmp.eq.f32.partialorder %v21, %v11
  %vm289 = vcmp.eq.f32.partialorder %v21, %v16
  %vm290 = vmor %vm288, %vm289
  %v291 = vsel %vm290, 1, 0
  %v292 = vcvt.s32.f32 %v291
  %v293 = vadd.f32 %v287, %v292
  %vm294 = vcmp.eq.f32.partialorder %v26, %v11
  %vm295 = vcmp.eq.f32.partialorder %v26, %v16
  %vm296 = vmor %vm294, %vm295
  %vm297 = vcmp.eq.f32.partialorder %v26, %v21
  %vm298 = vmor %vm296, %vm297
  %v299 = vsel %vm298, 1, 0
  %v300 = vcvt.s32.f32 %v299
  %v301 = vadd.f32 %v293, %v300
  %vm302 = vcmp.eq.f32.partialorder %v31, %v11
  %vm303 = vcmp.eq.f32.partialorder %v31, %v16
  %vm304 = vmor %vm302, %vm303
  %vm305 = vcmp.eq.f32.partialorder %v31, %v21
  %vm306 = vmor %vm304, %vm305
  %vm307 = vcmp.eq.f32.partialorder %v31, %v26
  %vm308 = vmor %vm306, %vm307
  %v309 = vsel %vm308, 1, 0
  %v310 = vcvt.s32.f32 %v309
  %v311 = vadd.f32 %v301, %v310
  %vm312 = vcmp.eq.f32.partialorder %v17, %v12
  %v313 = vsel %vm312, 1, 0
  %v314 = vcvt.s32.f32 %v313
  %v315 = vadd.f32 %v311, %v314
  %vm316 = vcmp.eq.f32.partialorder %v22, %v12
  %vm317 = vcmp.eq.f32.partialorder %v22, %v17
  %vm318 = vmor %vm316, %vm317
  %v319 = vsel %vm318, 1, 0
  %v320 = vcvt.s32.f32 %v319
  %v321 = vadd.f32 %v315, %v320
  %vm322 = vcmp.eq.f32.partialorder %v27, %v12
  %vm323 = vcmp.eq.f32.partialorder %v27, %v17
  %vm324 = vmor %vm322, %vm323
  %vm325 = vcmp.eq.f32.partialorder %v27, %v22
  %vm326 = vmor %vm324, %vm325
  %v327 = vsel %vm326, 1, 0
  %v328 = vcvt.s32.f32 %v327
  %v329 = vadd.f32 %v321, %v328
  %vm330 = vcmp.eq.f32.partialorder %v32, %v12
  %vm331 = vcmp.eq.f32.partialorder %v32, %v17
  %vm332 = vmor %vm330, %vm331
  %vm333 = vcmp.eq.f32.partialorder %v32, %v22
  %vm334 = vmor %vm332, %vm333
  %vm335 = vcmp.eq.f32.partialorder %v32, %v27
  %vm336 = vmor %vm334, %vm335
  %v337 = vsel %vm336, 1, 0
  %v338 = vcvt.s32.f32 %v337
  %v339 = vadd.f32 %v329, %v338
  %vm340 = vcmp.eq.f32.partialorder %v18, %v13
  %v341 = vsel %vm340, 1, 0
  %v342 = vcvt.s32.f32 %v341
  %v343 = vadd.f32 %v339, %v342
  %vm344 = vcmp.eq.f32.partialorder %v23, %v13
  %vm345 = vcmp.eq.f32.partialorder %v23, %v18
  %vm346 = vmor %vm344, %vm345
  %v347 = vsel %vm346, 1, 0
  %v348 = vcvt.s32.f32 %v347
  %v349 = vadd.f32 %v343, %v348
  %vm350 = vcmp.eq.f32.partialorder %v28, %v13
  %vm351 = vcmp.eq.f32.partialorder %v28, %v18
  %vm352 = vmor %vm350, %vm351
  %vm353 = vcmp.eq.f32.partialorder %v28, %v23
  %vm354 = vmor %vm352, %vm353
  %v355 = vsel %vm354, 1, 0
  %v356 = vcvt.s32.f32 %v355
  %v357 = vadd.f32 %v349, %v356
  %vm358 = vcmp.eq.f32.partialorder %v33, %v13
  %vm359 = vcmp.eq.f32.partialorder %v33, %v18
  %vm360 = vmor %vm358, %vm359
  %vm361 = vcmp.eq.f32.partialorder %v33, %v23
  %vm362 = vmor %vm360, %vm361
  %vm363 = vcmp.eq.f32.partialorder %v33, %v28
  %vm364 = vmor %vm362, %vm363
  %v365 = vsel %vm364, 1, 0
  %v366 = vcvt.s32.f32 %v365
  %v367 = vadd.f32 %v357, %v366
  %vm368 = vcmp.eq.f32.partialorder %v19, %v14
  %v369 = vsel %vm368, 1, 0
  %v370 = vcvt.s32.f32 %v369
  %v371 = vadd.f32 %v367, %v370
  %vm372 = vcmp.eq.f32.partialorder %v24, %v14
  %vm373 = vcmp.eq.f32.partialorder %v24, %v19
  %vm374 = vmor %vm372, %vm373
  %v375 = vsel %vm374, 1, 0
  %v376 = vcvt.s32.f32 %v375
  %v377 = vadd.f32 %v371, %v376
  %vm378 = vcmp.eq.f32.partialorder %v29, %v14
  %vm379 = vcmp.eq.f32.partialorder %v29, %v19
  %vm380 = vmor %vm378, %vm379
  %vm381 = vcmp.eq.f32.partialorder %v29, %v24
  %vm382 = vmor %vm380, %vm381
  %v383 = vsel %vm382, 1, 0
  %v384 = vcvt.s32.f32 %v383
  %v385 = vadd.f32 %v377, %v384
  %vm386 = vcmp.eq.f32.partialorder %v34, %v14
  %vm387 = vcmp.eq.f32.partialorder %v34, %v19
  %vm388 = vmor %vm386, %vm387
  %vm389 = vcmp.eq.f32.partialorder %v34, %v24
  %vm390 = vmor %vm388, %vm389
  %vm391 = vcmp.eq.f32.partialorder %v34, %v29
  %vm392 = vmor %vm390, %vm391
  %v393 = vsel %vm392, 1, 0
  %v394 = vcvt.s32.f32 %v393
  %v395 = vadd.f32 %v385, %v394
  %vm396 = vcmp.eq.f32.partialorder %v20, %v15
  %v397 = vsel %vm396, 1, 0
  %v398 = vcvt.s32.f32 %v397
  %v399 = vadd.f32 %v395, %v398
  %vm400 = vcmp.eq.f32.partialorder %v25, %v15
  %vm401 = vcmp.eq.f32.partialorder %v25, %v20
  %vm402 = vmor %vm400, %vm401
  %v403 = vsel %vm402, 1, 0
  %v404 = vcvt.s32.f32 %v403
  %v405 = vadd.f32 %v399, %v404
  %vm406 = vcmp.eq.f32.partialorder %v30, %v15
  %vm407 = vcmp.eq.f32.partialorder %v30, %v20
  %vm408 = vmor %vm406, %vm407
  %vm409 = vcmp.eq.f32.partialorder %v30, %v25
  %vm410 = vmor %vm408, %vm409
  %v411 = vsel %vm410, 1, 0
  %v412 = vcvt.s32.f32 %v411
  %v413 = vadd.f32 %v405, %v412
  %vm414 = vcmp.eq.f32.partialorder %v35, %v15
  %vm415 = vcmp.eq.f32.partialorder %v35, %v20
  %vm416 = vmor %vm414, %vm415
  %vm417 = vcmp.eq.f32.partialorder %v35, %v25
  %vm418 = vmor %vm416, %vm417
  %vm419 = vcmp.eq.f32.partialorder %v35, %v30
  %vm420 = vmor %vm418, %vm419
  %v421 = vsel %vm420, 1, 0
  %v422 = vcvt.s32.f32 %v421
  %v423 = vadd.f32 %v413, %v422
  %424 = vadd.xlane.f32.xlu0 %v423
  %v425 = vpop.xlane.xlu0 %424
  %v426 = vrot.slane %v425, 4
  %v427 = vadd.f32 %v425, %v426
  %v428 = vrot.slane %v427, 2
  %v429 = vadd.f32 %v427, %v428
  %v430 = vrot.slane %v429, 1
  %v431 = vadd.f32 %v429, %v430
  %s432 = vtos %v431
  %vm433 = vcmp.lt.f32.partialorder %v11, 0.5
  %vm434 = vcmp.lt.f32.partialorder %v12, 0.5
  %vm435 = vcmp.lt.f32.partialorder %v13, 0.5
  %vm436 = vcmp.lt.f32.partialorder %v14, 0.5
  %vm437 = vcmp.lt.f32.partialorder %v15, 0.5
  %vm438 = vcmp.lt.f32.partialorder %v16, 0.5
  %vm439 = vcmp.lt.f32.partialorder %v17, 0.5
  %vm440 = vcmp.lt.f32.partialorder %v18, 0.5
  %vm441 = vcmp.lt.f32.partialorder %v19, 0.5
  %vm442 = vcmp.lt.f32.partialorder %v20, 0.5
  %vm443 = vcmp.lt.f32.partialorder %v21, 0.5
  %vm444 = vcmp.lt.f32.partialorder %v22, 0.5
  %vm445 = vcmp.lt.f32.partialorder %v23, 0.5
  %vm446 = vcmp.lt.f32.partialorder %v24, 0.5
  %vm447 = vcmp.lt.f32.partialorder %v25, 0.5
  %vm448 = vcmp.lt.f32.partialorder %v26, 0.5
  %vm449 = vcmp.lt.f32.partialorder %v27, 0.5
  %vm450 = vcmp.lt.f32.partialorder %v28, 0.5
  %vm451 = vcmp.lt.f32.partialorder %v29, 0.5
  %vm452 = vcmp.lt.f32.partialorder %v30, 0.5
  %vm453 = vcmp.lt.f32.partialorder %v31, 0.5
  %vm454 = vcmp.lt.f32.partialorder %v32, 0.5
  %vm455 = vcmp.lt.f32.partialorder %v33, 0.5
  %vm456 = vcmp.lt.f32.partialorder %v34, 0.5
  %vm457 = vcmp.lt.f32.partialorder %v35, 0.5
  %vm458 = vcmp.gt.f32.partialorder %v11, 5.5
  %vm459 = vcmp.gt.f32.partialorder %v12, 5.5
  %vm460 = vcmp.gt.f32.partialorder %v13, 5.5
  %vm461 = vcmp.gt.f32.partialorder %v14, 5.5
  %vm462 = vcmp.gt.f32.partialorder %v15, 5.5
  %vm463 = vcmp.gt.f32.partialorder %v16, 5.5
  %vm464 = vcmp.gt.f32.partialorder %v17, 5.5
  %vm465 = vcmp.gt.f32.partialorder %v18, 5.5
  %vm466 = vcmp.gt.f32.partialorder %v19, 5.5
  %vm467 = vcmp.gt.f32.partialorder %v20, 5.5
  %vm468 = vcmp.gt.f32.partialorder %v21, 5.5
  %vm469 = vcmp.gt.f32.partialorder %v22, 5.5
  %vm470 = vcmp.gt.f32.partialorder %v23, 5.5
  %vm471 = vcmp.gt.f32.partialorder %v24, 5.5
  %vm472 = vcmp.gt.f32.partialorder %v25, 5.5
  %vm473 = vcmp.gt.f32.partialorder %v26, 5.5
  %vm474 = vcmp.gt.f32.partialorder %v27, 5.5
  %vm475 = vcmp.gt.f32.partialorder %v28, 5.5
  %vm476 = vcmp.gt.f32.partialorder %v29, 5.5
  %vm477 = vcmp.gt.f32.partialorder %v30, 5.5
  %vm478 = vcmp.gt.f32.partialorder %v31, 5.5
  %vm479 = vcmp.gt.f32.partialorder %v32, 5.5
  %vm480 = vcmp.gt.f32.partialorder %v33, 5.5
  %vm481 = vcmp.gt.f32.partialorder %v34, 5.5
  %vm482 = vcmp.gt.f32.partialorder %v35, 5.5
  %vm483 = vmor %vm433, %vm458
  %vm484 = vmor %vm434, %vm459
  %vm485 = vmor %vm435, %vm460
  %vm486 = vmor %vm436, %vm461
  %vm487 = vmor %vm437, %vm462
  %vm488 = vmor %vm438, %vm463
  %vm489 = vmor %vm439, %vm464
  %vm490 = vmor %vm440, %vm465
  %vm491 = vmor %vm441, %vm466
  %vm492 = vmor %vm442, %vm467
  %vm493 = vmor %vm443, %vm468
  %vm494 = vmor %vm444, %vm469
  %vm495 = vmor %vm445, %vm470
  %vm496 = vmor %vm446, %vm471
  %vm497 = vmor %vm447, %vm472
  %vm498 = vmor %vm448, %vm473
  %vm499 = vmor %vm449, %vm474
  %vm500 = vmor %vm450, %vm475
  %vm501 = vmor %vm451, %vm476
  %vm502 = vmor %vm452, %vm477
  %vm503 = vmor %vm453, %vm478
  %vm504 = vmor %vm454, %vm479
  %vm505 = vmor %vm455, %vm480
  %vm506 = vmor %vm456, %vm481
  %vm507 = vmor %vm457, %vm482
  %v508 = vsel %vm483, 1, 0
  %v509 = vsel %vm484, 1, 0
  %v510 = vsel %vm485, 1, 0
  %v511 = vsel %vm486, 1, 0
  %v512 = vsel %vm487, 1, 0
  %v513 = vsel %vm488, 1, 0
  %v514 = vsel %vm489, 1, 0
  %v515 = vsel %vm490, 1, 0
  %v516 = vsel %vm491, 1, 0
  %v517 = vsel %vm492, 1, 0
  %v518 = vsel %vm493, 1, 0
  %v519 = vsel %vm494, 1, 0
  %v520 = vsel %vm495, 1, 0
  %v521 = vsel %vm496, 1, 0
  %v522 = vsel %vm497, 1, 0
  %v523 = vsel %vm498, 1, 0
  %v524 = vsel %vm499, 1, 0
  %v525 = vsel %vm500, 1, 0
  %v526 = vsel %vm501, 1, 0
  %v527 = vsel %vm502, 1, 0
  %v528 = vsel %vm503, 1, 0
  %v529 = vsel %vm504, 1, 0
  %v530 = vsel %vm505, 1, 0
  %v531 = vsel %vm506, 1, 0
  %v532 = vsel %vm507, 1, 0
  %v533 = vcvt.s32.f32 %v508
  %v534 = vcvt.s32.f32 %v509
  %v535 = vcvt.s32.f32 %v510
  %v536 = vcvt.s32.f32 %v511
  %v537 = vcvt.s32.f32 %v512
  %v538 = vcvt.s32.f32 %v513
  %v539 = vcvt.s32.f32 %v514
  %v540 = vcvt.s32.f32 %v515
  %v541 = vcvt.s32.f32 %v516
  %v542 = vcvt.s32.f32 %v517
  %v543 = vcvt.s32.f32 %v518
  %v544 = vcvt.s32.f32 %v519
  %v545 = vcvt.s32.f32 %v520
  %v546 = vcvt.s32.f32 %v521
  %v547 = vcvt.s32.f32 %v522
  %v548 = vcvt.s32.f32 %v523
  %v549 = vcvt.s32.f32 %v524
  %v550 = vcvt.s32.f32 %v525
  %v551 = vcvt.s32.f32 %v526
  %v552 = vcvt.s32.f32 %v527
  %v553 = vcvt.s32.f32 %v528
  %v554 = vcvt.s32.f32 %v529
  %v555 = vcvt.s32.f32 %v530
  %v556 = vcvt.s32.f32 %v531
  %v557 = vcvt.s32.f32 %v532
  %v558 = vmax.f32 %v533, %v537
  %v559 = vmax.f32 %v534, %v538
  %v560 = vmax.f32 %v535, %v539
  %v561 = vmax.f32 %v536, %v540
  %v562 = vmax.f32 %v558, %v541
  %v563 = vmax.f32 %v559, %v542
  %v564 = vmax.f32 %v560, %v543
  %v565 = vmax.f32 %v561, %v544
  %v566 = vmax.f32 %v562, %v545
  %v567 = vmax.f32 %v563, %v546
  %v568 = vmax.f32 %v564, %v547
  %v569 = vmax.f32 %v565, %v548
  %v570 = vmax.f32 %v566, %v549
  %v571 = vmax.f32 %v567, %v550
  %v572 = vmax.f32 %v568, %v551
  %v573 = vmax.f32 %v569, %v552
  %v574 = vmax.f32 %v570, %v553
  %v575 = vmax.f32 %v571, %v554
  %v576 = vmax.f32 %v572, %v555
  %v577 = vmax.f32 %v573, %v556
  %v578 = vmax.f32 %v574, %v557
  %v579 = vmax.f32 %v578, %v575
  %v580 = vmax.f32 %v576, %v577
  %v581 = vmax.f32 %v579, %v580
  %582 = vmax.xlane.f32.xlu0 %v581
  %v583 = vpop.xlane.xlu0 %582
  %v584 = vrot.slane %v583, 4
  %v585 = vmax.f32 %v583, %v584
  %v586 = vrot.slane %v585, 2
  %v587 = vmax.f32 %v585, %v586
  %v588 = vrot.slane %v587, 1
  %v589 = vmax.f32 %v587, %v588
  %s590 = vtos %v589
  %v591 = vlaneseq
  %v592 = vand.u32 %v591, 127
  %vm593 = vcmp.eq.s32.totalorder %v592, 0
  %vm594 = vcmp.eq.s32.totalorder %v592, 1
  %vm595 = vcmp.eq.s32.totalorder %v592, 2
  %v596 = vstv %s590
  %v597 = vsel %vm595, %v596, 0.0
  %v598 = vstv %s432
  %v599 = vsel %vm594, %v598, %v597
  %v600 = vstv %s143
  %v601 = vsel %vm593, %v600, %v599
  %602 = vst [vmem:[%s2] sm:$0xff] %v601
  // Predicated region
  $region10: #{custom_puzzle_loss.1} parent=0 // pred_check
    _
  $region11: #{custom_puzzle_loss.1} parent=0 // pred_check_branch
    %604 = sbr.rel (0) target = $region13
  $region12: #{custom_puzzle_loss.1} parent=0 // pred_region
    _
  $region13: #{custom_puzzle_loss.1} parent=0 // pred_fallthru
    _
  // Predicated region
  $region14: #{custom_puzzle_loss.1} parent=0 // pred_check
    _
  $region15: #{custom_puzzle_loss.1} parent=0 // pred_check_branch
    %606 = sbr.rel (0) target = $region17
  $region16: #{custom_puzzle_loss.1} parent=0 // pred_region
    _
  $region17: #{custom_puzzle_loss.1} parent=0 // pred_fallthru
    _

</llo_original>
